<compile_context>
chip_gen: v7x
topology: tpu7x:2x2x1
jax: 0.10.0
libtpu: 0.0.40
codegen_flags: <defaults>
</compile_context>

<pallas_src>
import functools

import jax
import jax.numpy as jnp
from jax import lax
from jax.experimental import pallas as pl
from jax.experimental.pallas import tpu as pltpu

LANES = 128                          # vreg lane width
IN_F = 2                             # SimpleNN input features  (interleave trick assumes 2)
OUT_F = 2                            # SimpleNN output features (interleave trick assumes 2)
ROWS_PER_SLAB_ROW = LANES // IN_F    # 64 batch rows per 128-lane slab row
CHUNK_S = 8                          # sublane rows per inner step (exactly one vreg/array)
MAX_BLOCK_S = 512                    # sublane rows per grid step (512*64 = 32768 rows)
MIN_BLOCKS = 4                       # >=4 grid steps -> DMA/compute overlap + 2 TCs on v7x


def _cdiv(a, b):
    return -(-a // b)


def _round_up(a, b):
    return _cdiv(a, b) * b


def _simple_nn_kernel(w1_ref, b1_ref, w2_ref, b2_ref, x_ref, o_ref, *, compute_dtype):
    """x_ref/o_ref: [block_s, 128] VMEM blocks holding the natural row-major [B,2] data:
    lane 2j = batch row j's feature 0, lane 2j+1 = feature 1 (same interleave on output).
    w1_ref [10,2], b1_ref [10], w2_ref [2,10], b2_ref [2] live in SMEM."""
    hid = w1_ref.shape[0]
    block_s, lanes = x_ref.shape
    num_chunks = block_s // CHUNK_S
    cdt = compute_dtype

    # ---- hoisted scalar weight reads (SMEM -> sregs), once per grid step ----
    w10 = [w1_ref[f, 0].astype(cdt) for f in range(hid)]
    w11 = [w1_ref[f, 1].astype(cdt) for f in range(hid)]

    # ---- hoisted broadcast constants (built once, reused by every chunk iteration) ----
    lane = lax.broadcasted_iota(jnp.int32, (CHUNK_S, lanes), 1)
    even = (lane & 1) == 0                                         # lane-parity mask
    b1v = [jnp.full((CHUNK_S, lanes), b1_ref[f], dtype=cdt) for f in range(hid)]
    # layer-2 lane-parity coefficients: w2[0,f] on even (out-feature-0) lanes, w2[1,f] on odd
    d = [jnp.where(even, w2_ref[0, f], w2_ref[1, f]).astype(cdt) for f in range(hid)]
    # layer-2 bias, interleaved exactly like the output slab
    out_bias = jnp.where(even, b2_ref[0], b2_ref[1]).astype(cdt)

    def chunk(c, carry):
        r = pl.multiple_of(c * CHUNK_S, CHUNK_S)
        xin = x_ref[pl.ds(r, CHUNK_S), :]
        # In-kernel de-interleave (XLU rolls + parity selects): replicate each batch row's
        # two features onto both lanes of its (even, odd) lane pair.
        x0 = jnp.where(even, xin, pltpu.roll(xin, 1, axis=1)).astype(cdt)           # feat 0
        x1 = jnp.where(even, pltpu.roll(xin, lanes - 1, axis=1), xin).astype(cdt)   # feat 1
        # Fused Linear(2,10) -> ReLU -> Linear(10,2) as VPU broadcast-FMAs (keep off MXU).
        acc = out_bias
        for f in range(hid):
            h = jnp.maximum(w10[f] * x0 + w11[f] * x1 + b1v[f], 0)
            acc = acc + d[f] * h
        # acc already carries the interleaved [o0, o1, ...] layout: full-width lane-dense store.
        o_ref[pl.ds(r, CHUNK_S), :] = acc.astype(o_ref.dtype)
        return carry

    lax.fori_loop(0, num_chunks, chunk, 0, unroll=2)


def simple_nn_forward(x, w1, b1, w2, b2, use_pallas=None, compute_dtype=jnp.float32):
    """SimpleNN forward.  x: [B, 2]; w1: [10, 2]; b1: [10]; w2: [2, 10]; b2: [2]
    (PyTorch nn.Linear layout).  compute_dtype=jnp.bfloat16 is recommended on v6e/v7x."""
    B, in_f = x.shape
    out_f = w2.shape[0]
    assert in_f == IN_F and out_f == OUT_F, "lane-interleave trick is specialized to 2->hid->2"

    if use_pallas is None:
        use_pallas = B >= 4096            # tiny batches: let XLA fuse the two small dots
    if not use_pallas:
        return jnp.maximum(x @ w1.T + b1, 0.0) @ w2.T + b2

    # ---- grid sizing: big lane-dense blocks, but never fewer than 4 (even) grid steps ----
    s_total = _cdiv(B, ROWS_PER_SLAB_ROW)               # 128-lane slab rows needed
    s_chunks = _cdiv(s_total, CHUNK_S)
    n_blocks = max(_cdiv(s_total, MAX_BLOCK_S), min(MIN_BLOCKS, s_chunks))
    if n_blocks > 1 and n_blocks % 2:
        n_blocks += 1                                    # even tile count -> both v7x TCs busy
    block_s = _round_up(_cdiv(s_total, n_blocks), CHUNK_S)
    s_pad = n_blocks * block_s
    b_pad = s_pad * ROWS_PER_SLAB_ROW

    # ---- layout plumbing: pure row-major reshape, NO transpose pass in the wrapper ----
    x_p = x if b_pad == B else jnp.pad(x, ((0, b_pad - B), (0, 0)))
    x_slab = x_p.reshape(s_pad, LANES)                   # lanes: [r0f0, r0f1, r1f0, r1f1, ...]

    f32 = jnp.float32
    out = pl.pallas_call(
        functools.partial(_simple_nn_kernel, compute_dtype=compute_dtype),
        out_shape=jax.ShapeDtypeStruct((s_pad, LANES), x.dtype),
        grid=(n_blocks,),
        in_specs=[
            pl.BlockSpec(memory_space=pltpu.MemorySpace.SMEM),   # w1 [10, 2]
            pl.BlockSpec(memory_space=pltpu.MemorySpace.SMEM),   # b1 [10]
            pl.BlockSpec(memory_space=pltpu.MemorySpace.SMEM),   # w2 [2, 10]
            pl.BlockSpec(memory_space=pltpu.MemorySpace.SMEM),   # b2 [2]
            pl.BlockSpec((block_s, LANES), lambda i: (i, 0)),    # x slab, batch tiles
        ],
        out_specs=pl.BlockSpec((block_s, LANES), lambda i: (i, 0)),
        compiler_params=pltpu.CompilerParams(
            dimension_semantics=("parallel",)),          # batch tiles shard across TCs (v7x)
    )(w1.astype(f32), b1.astype(f32), w2.astype(f32), b2.astype(f32), x_slab)

    # Output slab is already row-major [b_pad, 2]: reshape + slice, no transpose.
    return out.reshape(b_pad, OUT_F)[:B]


if __name__ == "__main__":
    key = jax.random.PRNGKey(0)
    k_x, k_w1, k_b1, k_w2, k_b2 = jax.random.split(key, 5)

    # Deterministic parameters, shapes from nn.Linear(2, 10) / nn.Linear(10, 2).
    w1 = jax.random.normal(k_w1, (10, 2), dtype=jnp.float32) * 0.1
    b1 = jax.random.normal(k_b1, (10,), dtype=jnp.float32) * 0.1
    w2 = jax.random.normal(k_w2, (2, 10), dtype=jnp.float32) * 0.1
    b2 = jax.random.normal(k_b2, (2,), dtype=jnp.float32) * 0.1

    def ref(xv):
        return jnp.maximum(xv @ w1.T + b1, 0.0) @ w2.T + b2

    fwd = jax.jit(simple_nn_forward, static_argnames=("use_pallas", "compute_dtype"))

    # 1) multi-block Pallas path (grid=(4,), no padding): B = 4096 rows, f32 compute.
    x = jax.random.normal(jax.random.fold_in(k_x, 0), (4096, 2), dtype=jnp.float32)
    y = fwd(x, w1, b1, w2, b2)
    jax.block_until_ready(y)
    assert y.shape == (4096, 2), y.shape
    assert jnp.allclose(y, ref(x), atol=1e-5, rtol=1e-5), "f32 Pallas mismatch vs reference"

    # 2) ragged small batch forced through Pallas (exercises padding + tail discard).
    x2 = jax.random.normal(jax.random.fold_in(k_x, 1), (257, 2), dtype=jnp.float32)
    y2 = fwd(x2, w1, b1, w2, b2, use_pallas=True)
    jax.block_until_ready(y2)
    assert y2.shape == (257, 2), y2.shape
    assert jnp.allclose(y2, ref(x2), atol=1e-5, rtol=1e-5), "ragged Pallas mismatch"

    # 3) bf16 VALU path (the v6e/v7x recommendation) — loose tolerance vs f32 reference.
    y3 = fwd(x, w1, b1, w2, b2, use_pallas=True, compute_dtype=jnp.bfloat16)
    jax.block_until_ready(y3)
    assert jnp.allclose(y3, ref(x), atol=5e-2, rtol=0), "bf16 Pallas mismatch"

    # 4) tiny batch takes the plain-XLA fallback (heuristic path).
    x4 = jax.random.normal(jax.random.fold_in(k_x, 2), (8, 2), dtype=jnp.float32)
    y4 = fwd(x4, w1, b1, w2, b2)
    jax.block_until_ready(y4)
    assert jnp.allclose(y4, ref(x4), atol=1e-5, rtol=1e-5), "fallback mismatch"

    print("KERNEL_OK")
</pallas_src>

<mosaic_0001>
module attributes {stable_mosaic.version = 11 : i64} {
  func.func @_simple_nn_kernel(%arg0: i32, %arg1: memref<10x2xf32, #tpu.memory_space<smem>>, %arg2: memref<10xf32, #tpu.memory_space<smem>>, %arg3: memref<2x10xf32, #tpu.memory_space<smem>>, %arg4: memref<2xf32, #tpu.memory_space<smem>>, %arg5: memref<16x128xf32, #tpu.memory_space<vmem>>, %arg6: memref<16x128xf32, #tpu.memory_space<vmem>>) attributes {dimension_semantics = [#tpu.dimension_semantics<parallel>], iteration_bounds = array<i64: 4>, scalar_prefetch = 0 : i64, scratch_operands = 0 : i64, tpu.core_type = #tpu.core_type<tc>, window_params = [{transform_indices = @transform_0, window_bounds = array<i64: 10, 2>}, {transform_indices = @transform_1, window_bounds = array<i64: 10>}, {transform_indices = @transform_2, window_bounds = array<i64: 2, 10>}, {transform_indices = @transform_3, window_bounds = array<i64: 2>}, {transform_indices = @transform_4, window_bounds = array<i64: 16, 128>}, {transform_indices = @transform_5, window_bounds = array<i64: 16, 128>}]} {
    %c0 = arith.constant 0 : index
    %c0_0 = arith.constant 0 : index
    %0 = memref.load %arg1[%c0, %c0_0] : memref<10x2xf32, #tpu.memory_space<smem>>
    %c1 = arith.constant 1 : index
    %c0_1 = arith.constant 0 : index
    %1 = memref.load %arg1[%c1, %c0_1] : memref<10x2xf32, #tpu.memory_space<smem>>
    %c2 = arith.constant 2 : index
    %c0_2 = arith.constant 0 : index
    %2 = memref.load %arg1[%c2, %c0_2] : memref<10x2xf32, #tpu.memory_space<smem>>
    %c3 = arith.constant 3 : index
    %c0_3 = arith.constant 0 : index
    %3 = memref.load %arg1[%c3, %c0_3] : memref<10x2xf32, #tpu.memory_space<smem>>
    %c4 = arith.constant 4 : index
    %c0_4 = arith.constant 0 : index
    %4 = memref.load %arg1[%c4, %c0_4] : memref<10x2xf32, #tpu.memory_space<smem>>
    %c5 = arith.constant 5 : index
    %c0_5 = arith.constant 0 : index
    %5 = memref.load %arg1[%c5, %c0_5] : memref<10x2xf32, #tpu.memory_space<smem>>
    %c6 = arith.constant 6 : index
    %c0_6 = arith.constant 0 : index
    %6 = memref.load %arg1[%c6, %c0_6] : memref<10x2xf32, #tpu.memory_space<smem>>
    %c7 = arith.constant 7 : index
    %c0_7 = arith.constant 0 : index
    %7 = memref.load %arg1[%c7, %c0_7] : memref<10x2xf32, #tpu.memory_space<smem>>
    %c8 = arith.constant 8 : index
    %c0_8 = arith.constant 0 : index
    %8 = memref.load %arg1[%c8, %c0_8] : memref<10x2xf32, #tpu.memory_space<smem>>
    %c9 = arith.constant 9 : index
    %c0_9 = arith.constant 0 : index
    %9 = memref.load %arg1[%c9, %c0_9] : memref<10x2xf32, #tpu.memory_space<smem>>
    %c0_10 = arith.constant 0 : index
    %c1_11 = arith.constant 1 : index
    %10 = memref.load %arg1[%c0_10, %c1_11] : memref<10x2xf32, #tpu.memory_space<smem>>
    %c1_12 = arith.constant 1 : index
    %c1_13 = arith.constant 1 : index
    %11 = memref.load %arg1[%c1_12, %c1_13] : memref<10x2xf32, #tpu.memory_space<smem>>
    %c2_14 = arith.constant 2 : index
    %c1_15 = arith.constant 1 : index
    %12 = memref.load %arg1[%c2_14, %c1_15] : memref<10x2xf32, #tpu.memory_space<smem>>
    %c3_16 = arith.constant 3 : index
    %c1_17 = arith.constant 1 : index
    %13 = memref.load %arg1[%c3_16, %c1_17] : memref<10x2xf32, #tpu.memory_space<smem>>
    %c4_18 = arith.constant 4 : index
    %c1_19 = arith.constant 1 : index
    %14 = memref.load %arg1[%c4_18, %c1_19] : memref<10x2xf32, #tpu.memory_space<smem>>
    %c5_20 = arith.constant 5 : index
    %c1_21 = arith.constant 1 : index
    %15 = memref.load %arg1[%c5_20, %c1_21] : memref<10x2xf32, #tpu.memory_space<smem>>
    %c6_22 = arith.constant 6 : index
    %c1_23 = arith.constant 1 : index
    %16 = memref.load %arg1[%c6_22, %c1_23] : memref<10x2xf32, #tpu.memory_space<smem>>
    %c7_24 = arith.constant 7 : index
    %c1_25 = arith.constant 1 : index
    %17 = memref.load %arg1[%c7_24, %c1_25] : memref<10x2xf32, #tpu.memory_space<smem>>
    %c8_26 = arith.constant 8 : index
    %c1_27 = arith.constant 1 : index
    %18 = memref.load %arg1[%c8_26, %c1_27] : memref<10x2xf32, #tpu.memory_space<smem>>
    %c9_28 = arith.constant 9 : index
    %c1_29 = arith.constant 1 : index
    %19 = memref.load %arg1[%c9_28, %c1_29] : memref<10x2xf32, #tpu.memory_space<smem>>
    %20 = tpu.iota {dimensions = array<i32: 1>} : vector<8x128xi32>
    %c1_i32 = arith.constant 1 : i32
    %21 = vector.broadcast %c1_i32 : i32 to vector<8x128xi32>
    %22 = arith.andi %20, %21 : vector<8x128xi32>
    %c0_i32 = arith.constant 0 : i32
    %23 = vector.broadcast %c0_i32 : i32 to vector<8x128xi32>
    %24 = arith.cmpi eq, %22, %23 : vector<8x128xi32>
    %c0_30 = arith.constant 0 : index
    %25 = memref.load %arg2[%c0_30] : memref<10xf32, #tpu.memory_space<smem>>
    %26 = vector.broadcast %25 : f32 to vector<8x128xf32>
    %c1_31 = arith.constant 1 : index
    %27 = memref.load %arg2[%c1_31] : memref<10xf32, #tpu.memory_space<smem>>
    %28 = vector.broadcast %27 : f32 to vector<8x128xf32>
    %c2_32 = arith.constant 2 : index
    %29 = memref.load %arg2[%c2_32] : memref<10xf32, #tpu.memory_space<smem>>
    %30 = vector.broadcast %29 : f32 to vector<8x128xf32>
    %c3_33 = arith.constant 3 : index
    %31 = memref.load %arg2[%c3_33] : memref<10xf32, #tpu.memory_space<smem>>
    %32 = vector.broadcast %31 : f32 to vector<8x128xf32>
    %c4_34 = arith.constant 4 : index
    %33 = memref.load %arg2[%c4_34] : memref<10xf32, #tpu.memory_space<smem>>
    %34 = vector.broadcast %33 : f32 to vector<8x128xf32>
    %c5_35 = arith.constant 5 : index
    %35 = memref.load %arg2[%c5_35] : memref<10xf32, #tpu.memory_space<smem>>
    %36 = vector.broadcast %35 : f32 to vector<8x128xf32>
    %c6_36 = arith.constant 6 : index
    %37 = memref.load %arg2[%c6_36] : memref<10xf32, #tpu.memory_space<smem>>
    %38 = vector.broadcast %37 : f32 to vector<8x128xf32>
    %c7_37 = arith.constant 7 : index
    %39 = memref.load %arg2[%c7_37] : memref<10xf32, #tpu.memory_space<smem>>
    %40 = vector.broadcast %39 : f32 to vector<8x128xf32>
    %c8_38 = arith.constant 8 : index
    %41 = memref.load %arg2[%c8_38] : memref<10xf32, #tpu.memory_space<smem>>
    %42 = vector.broadcast %41 : f32 to vector<8x128xf32>
    %c9_39 = arith.constant 9 : index
    %43 = memref.load %arg2[%c9_39] : memref<10xf32, #tpu.memory_space<smem>>
    %44 = vector.broadcast %43 : f32 to vector<8x128xf32>
    %c0_40 = arith.constant 0 : index
    %c0_41 = arith.constant 0 : index
    %45 = memref.load %arg3[%c0_40, %c0_41] : memref<2x10xf32, #tpu.memory_space<smem>>
    %c1_42 = arith.constant 1 : index
    %c0_43 = arith.constant 0 : index
    %46 = memref.load %arg3[%c1_42, %c0_43] : memref<2x10xf32, #tpu.memory_space<smem>>
    %47 = vector.broadcast %45 : f32 to vector<8x128xf32>
    %48 = vector.broadcast %46 : f32 to vector<8x128xf32>
    %49 = arith.select %24, %47, %48 : vector<8x128xi1>, vector<8x128xf32>
    %c0_44 = arith.constant 0 : index
    %c1_45 = arith.constant 1 : index
    %50 = memref.load %arg3[%c0_44, %c1_45] : memref<2x10xf32, #tpu.memory_space<smem>>
    %c1_46 = arith.constant 1 : index
    %c1_47 = arith.constant 1 : index
    %51 = memref.load %arg3[%c1_46, %c1_47] : memref<2x10xf32, #tpu.memory_space<smem>>
    %52 = vector.broadcast %50 : f32 to vector<8x128xf32>
    %53 = vector.broadcast %51 : f32 to vector<8x128xf32>
    %54 = arith.select %24, %52, %53 : vector<8x128xi1>, vector<8x128xf32>
    %c0_48 = arith.constant 0 : index
    %c2_49 = arith.constant 2 : index
    %55 = memref.load %arg3[%c0_48, %c2_49] : memref<2x10xf32, #tpu.memory_space<smem>>
    %c1_50 = arith.constant 1 : index
    %c2_51 = arith.constant 2 : index
    %56 = memref.load %arg3[%c1_50, %c2_51] : memref<2x10xf32, #tpu.memory_space<smem>>
    %57 = vector.broadcast %55 : f32 to vector<8x128xf32>
    %58 = vector.broadcast %56 : f32 to vector<8x128xf32>
    %59 = arith.select %24, %57, %58 : vector<8x128xi1>, vector<8x128xf32>
    %c0_52 = arith.constant 0 : index
    %c3_53 = arith.constant 3 : index
    %60 = memref.load %arg3[%c0_52, %c3_53] : memref<2x10xf32, #tpu.memory_space<smem>>
    %c1_54 = arith.constant 1 : index
    %c3_55 = arith.constant 3 : index
    %61 = memref.load %arg3[%c1_54, %c3_55] : memref<2x10xf32, #tpu.memory_space<smem>>
    %62 = vector.broadcast %60 : f32 to vector<8x128xf32>
    %63 = vector.broadcast %61 : f32 to vector<8x128xf32>
    %64 = arith.select %24, %62, %63 : vector<8x128xi1>, vector<8x128xf32>
    %c0_56 = arith.constant 0 : index
    %c4_57 = arith.constant 4 : index
    %65 = memref.load %arg3[%c0_56, %c4_57] : memref<2x10xf32, #tpu.memory_space<smem>>
    %c1_58 = arith.constant 1 : index
    %c4_59 = arith.constant 4 : index
    %66 = memref.load %arg3[%c1_58, %c4_59] : memref<2x10xf32, #tpu.memory_space<smem>>
    %67 = vector.broadcast %65 : f32 to vector<8x128xf32>
    %68 = vector.broadcast %66 : f32 to vector<8x128xf32>
    %69 = arith.select %24, %67, %68 : vector<8x128xi1>, vector<8x128xf32>
    %c0_60 = arith.constant 0 : index
    %c5_61 = arith.constant 5 : index
    %70 = memref.load %arg3[%c0_60, %c5_61] : memref<2x10xf32, #tpu.memory_space<smem>>
    %c1_62 = arith.constant 1 : index
    %c5_63 = arith.constant 5 : index
    %71 = memref.load %arg3[%c1_62, %c5_63] : memref<2x10xf32, #tpu.memory_space<smem>>
    %72 = vector.broadcast %70 : f32 to vector<8x128xf32>
    %73 = vector.broadcast %71 : f32 to vector<8x128xf32>
    %74 = arith.select %24, %72, %73 : vector<8x128xi1>, vector<8x128xf32>
    %c0_64 = arith.constant 0 : index
    %c6_65 = arith.constant 6 : index
    %75 = memref.load %arg3[%c0_64, %c6_65] : memref<2x10xf32, #tpu.memory_space<smem>>
    %c1_66 = arith.constant 1 : index
    %c6_67 = arith.constant 6 : index
    %76 = memref.load %arg3[%c1_66, %c6_67] : memref<2x10xf32, #tpu.memory_space<smem>>
    %77 = vector.broadcast %75 : f32 to vector<8x128xf32>
    %78 = vector.broadcast %76 : f32 to vector<8x128xf32>
    %79 = arith.select %24, %77, %78 : vector<8x128xi1>, vector<8x128xf32>
    %c0_68 = arith.constant 0 : index
    %c7_69 = arith.constant 7 : index
    %80 = memref.load %arg3[%c0_68, %c7_69] : memref<2x10xf32, #tpu.memory_space<smem>>
    %c1_70 = arith.constant 1 : index
    %c7_71 = arith.constant 7 : index
    %81 = memref.load %arg3[%c1_70, %c7_71] : memref<2x10xf32, #tpu.memory_space<smem>>
    %82 = vector.broadcast %80 : f32 to vector<8x128xf32>
    %83 = vector.broadcast %81 : f32 to vector<8x128xf32>
    %84 = arith.select %24, %82, %83 : vector<8x128xi1>, vector<8x128xf32>
    %c0_72 = arith.constant 0 : index
    %c8_73 = arith.constant 8 : index
    %85 = memref.load %arg3[%c0_72, %c8_73] : memref<2x10xf32, #tpu.memory_space<smem>>
    %c1_74 = arith.constant 1 : index
    %c8_75 = arith.constant 8 : index
    %86 = memref.load %arg3[%c1_74, %c8_75] : memref<2x10xf32, #tpu.memory_space<smem>>
    %87 = vector.broadcast %85 : f32 to vector<8x128xf32>
    %88 = vector.broadcast %86 : f32 to vector<8x128xf32>
    %89 = arith.select %24, %87, %88 : vector<8x128xi1>, vector<8x128xf32>
    %c0_76 = arith.constant 0 : index
    %c9_77 = arith.constant 9 : index
    %90 = memref.load %arg3[%c0_76, %c9_77] : memref<2x10xf32, #tpu.memory_space<smem>>
    %c1_78 = arith.constant 1 : index
    %c9_79 = arith.constant 9 : index
    %91 = memref.load %arg3[%c1_78, %c9_79] : memref<2x10xf32, #tpu.memory_space<smem>>
    %92 = vector.broadcast %90 : f32 to vector<8x128xf32>
    %93 = vector.broadcast %91 : f32 to vector<8x128xf32>
    %94 = arith.select %24, %92, %93 : vector<8x128xi1>, vector<8x128xf32>
    %c0_80 = arith.constant 0 : index
    %95 = memref.load %arg4[%c0_80] : memref<2xf32, #tpu.memory_space<smem>>
    %c1_81 = arith.constant 1 : index
    %96 = memref.load %arg4[%c1_81] : memref<2xf32, #tpu.memory_space<smem>>
    %97 = vector.broadcast %95 : f32 to vector<8x128xf32>
    %98 = vector.broadcast %96 : f32 to vector<8x128xf32>
    %99 = arith.select %24, %97, %98 : vector<8x128xi1>, vector<8x128xf32>
    %c0_i32_82 = arith.constant 0 : i32
    %c8_i32 = arith.constant 8 : i32
    %100 = arith.muli %c0_i32_82, %c8_i32 : i32
    %101 = tpu.assume_multiple %100, 8 : i32
    %102 = arith.index_cast %101 : i32 to index
    %c0_83 = arith.constant 0 : index
    %103 = vector.load %arg5[%102, %c0_83] : memref<16x128xf32, #tpu.memory_space<vmem>>, vector<8x128xf32>
    %c1_i32_84 = arith.constant 1 : i32
    %104 = tpu.dynamic_rotate %103 by %c1_i32_84 dim 1 : vector<8x128xf32>, i32 -> vector<8x128xf32>
    %105 = arith.select %24, %103, %104 : vector<8x128xi1>, vector<8x128xf32>
    %c127_i32 = arith.constant 127 : i32
    %106 = tpu.dynamic_rotate %103 by %c127_i32 dim 1 : vector<8x128xf32>, i32 -> vector<8x128xf32>
    %107 = arith.select %24, %106, %103 : vector<8x128xi1>, vector<8x128xf32>
    %108 = vector.broadcast %0 : f32 to vector<8x128xf32>
    %109 = arith.mulf %108, %105 : vector<8x128xf32>
    %110 = vector.broadcast %10 : f32 to vector<8x128xf32>
    %111 = arith.mulf %110, %107 : vector<8x128xf32>
    %112 = arith.addf %109, %111 : vector<8x128xf32>
    %113 = arith.addf %112, %26 : vector<8x128xf32>
    %cst = arith.constant 0.000000e+00 : f32
    %114 = vector.broadcast %cst : f32 to vector<8x128xf32>
    %115 = arith.maximumf %113, %114 : vector<8x128xf32>
    %116 = arith.mulf %49, %115 : vector<8x128xf32>
    %117 = arith.addf %99, %116 : vector<8x128xf32>
    %118 = vector.broadcast %1 : f32 to vector<8x128xf32>
    %119 = arith.mulf %118, %105 : vector<8x128xf32>
    %120 = vector.broadcast %11 : f32 to vector<8x128xf32>
    %121 = arith.mulf %120, %107 : vector<8x128xf32>
    %122 = arith.addf %119, %121 : vector<8x128xf32>
    %123 = arith.addf %122, %28 : vector<8x128xf32>
    %cst_85 = arith.constant 0.000000e+00 : f32
    %124 = vector.broadcast %cst_85 : f32 to vector<8x128xf32>
    %125 = arith.maximumf %123, %124 : vector<8x128xf32>
    %126 = arith.mulf %54, %125 : vector<8x128xf32>
    %127 = arith.addf %117, %126 : vector<8x128xf32>
    %128 = vector.broadcast %2 : f32 to vector<8x128xf32>
    %129 = arith.mulf %128, %105 : vector<8x128xf32>
    %130 = vector.broadcast %12 : f32 to vector<8x128xf32>
    %131 = arith.mulf %130, %107 : vector<8x128xf32>
    %132 = arith.addf %129, %131 : vector<8x128xf32>
    %133 = arith.addf %132, %30 : vector<8x128xf32>
    %cst_86 = arith.constant 0.000000e+00 : f32
    %134 = vector.broadcast %cst_86 : f32 to vector<8x128xf32>
    %135 = arith.maximumf %133, %134 : vector<8x128xf32>
    %136 = arith.mulf %59, %135 : vector<8x128xf32>
    %137 = arith.addf %127, %136 : vector<8x128xf32>
    %138 = vector.broadcast %3 : f32 to vector<8x128xf32>
    %139 = arith.mulf %138, %105 : vector<8x128xf32>
    %140 = vector.broadcast %13 : f32 to vector<8x128xf32>
    %141 = arith.mulf %140, %107 : vector<8x128xf32>
    %142 = arith.addf %139, %141 : vector<8x128xf32>
    %143 = arith.addf %142, %32 : vector<8x128xf32>
    %cst_87 = arith.constant 0.000000e+00 : f32
    %144 = vector.broadcast %cst_87 : f32 to vector<8x128xf32>
    %145 = arith.maximumf %143, %144 : vector<8x128xf32>
    %146 = arith.mulf %64, %145 : vector<8x128xf32>
    %147 = arith.addf %137, %146 : vector<8x128xf32>
    %148 = vector.broadcast %4 : f32 to vector<8x128xf32>
    %149 = arith.mulf %148, %105 : vector<8x128xf32>
    %150 = vector.broadcast %14 : f32 to vector<8x128xf32>
    %151 = arith.mulf %150, %107 : vector<8x128xf32>
    %152 = arith.addf %149, %151 : vector<8x128xf32>
    %153 = arith.addf %152, %34 : vector<8x128xf32>
    %cst_88 = arith.constant 0.000000e+00 : f32
    %154 = vector.broadcast %cst_88 : f32 to vector<8x128xf32>
    %155 = arith.maximumf %153, %154 : vector<8x128xf32>
    %156 = arith.mulf %69, %155 : vector<8x128xf32>
    %157 = arith.addf %147, %156 : vector<8x128xf32>
    %158 = vector.broadcast %5 : f32 to vector<8x128xf32>
    %159 = arith.mulf %158, %105 : vector<8x128xf32>
    %160 = vector.broadcast %15 : f32 to vector<8x128xf32>
    %161 = arith.mulf %160, %107 : vector<8x128xf32>
    %162 = arith.addf %159, %161 : vector<8x128xf32>
    %163 = arith.addf %162, %36 : vector<8x128xf32>
    %cst_89 = arith.constant 0.000000e+00 : f32
    %164 = vector.broadcast %cst_89 : f32 to vector<8x128xf32>
    %165 = arith.maximumf %163, %164 : vector<8x128xf32>
    %166 = arith.mulf %74, %165 : vector<8x128xf32>
    %167 = arith.addf %157, %166 : vector<8x128xf32>
    %168 = vector.broadcast %6 : f32 to vector<8x128xf32>
    %169 = arith.mulf %168, %105 : vector<8x128xf32>
    %170 = vector.broadcast %16 : f32 to vector<8x128xf32>
    %171 = arith.mulf %170, %107 : vector<8x128xf32>
    %172 = arith.addf %169, %171 : vector<8x128xf32>
    %173 = arith.addf %172, %38 : vector<8x128xf32>
    %cst_90 = arith.constant 0.000000e+00 : f32
    %174 = vector.broadcast %cst_90 : f32 to vector<8x128xf32>
    %175 = arith.maximumf %173, %174 : vector<8x128xf32>
    %176 = arith.mulf %79, %175 : vector<8x128xf32>
    %177 = arith.addf %167, %176 : vector<8x128xf32>
    %178 = vector.broadcast %7 : f32 to vector<8x128xf32>
    %179 = arith.mulf %178, %105 : vector<8x128xf32>
    %180 = vector.broadcast %17 : f32 to vector<8x128xf32>
    %181 = arith.mulf %180, %107 : vector<8x128xf32>
    %182 = arith.addf %179, %181 : vector<8x128xf32>
    %183 = arith.addf %182, %40 : vector<8x128xf32>
    %cst_91 = arith.constant 0.000000e+00 : f32
    %184 = vector.broadcast %cst_91 : f32 to vector<8x128xf32>
    %185 = arith.maximumf %183, %184 : vector<8x128xf32>
    %186 = arith.mulf %84, %185 : vector<8x128xf32>
    %187 = arith.addf %177, %186 : vector<8x128xf32>
    %188 = vector.broadcast %8 : f32 to vector<8x128xf32>
    %189 = arith.mulf %188, %105 : vector<8x128xf32>
    %190 = vector.broadcast %18 : f32 to vector<8x128xf32>
    %191 = arith.mulf %190, %107 : vector<8x128xf32>
    %192 = arith.addf %189, %191 : vector<8x128xf32>
    %193 = arith.addf %192, %42 : vector<8x128xf32>
    %cst_92 = arith.constant 0.000000e+00 : f32
    %194 = vector.broadcast %cst_92 : f32 to vector<8x128xf32>
    %195 = arith.maximumf %193, %194 : vector<8x128xf32>
    %196 = arith.mulf %89, %195 : vector<8x128xf32>
    %197 = arith.addf %187, %196 : vector<8x128xf32>
    %198 = vector.broadcast %9 : f32 to vector<8x128xf32>
    %199 = arith.mulf %198, %105 : vector<8x128xf32>
    %200 = vector.broadcast %19 : f32 to vector<8x128xf32>
    %201 = arith.mulf %200, %107 : vector<8x128xf32>
    %202 = arith.addf %199, %201 : vector<8x128xf32>
    %203 = arith.addf %202, %44 : vector<8x128xf32>
    %cst_93 = arith.constant 0.000000e+00 : f32
    %204 = vector.broadcast %cst_93 : f32 to vector<8x128xf32>
    %205 = arith.maximumf %203, %204 : vector<8x128xf32>
    %206 = arith.mulf %94, %205 : vector<8x128xf32>
    %207 = arith.addf %197, %206 : vector<8x128xf32>
    %208 = arith.index_cast %101 : i32 to index
    %c0_94 = arith.constant 0 : index
    %209 = vector.load %arg6[%208, %c0_94] : memref<16x128xf32, #tpu.memory_space<vmem>>, vector<8x128xf32>
    tpu.vector_store %arg6[%208, %c0_94], %207 {strides = array<i32>} : memref<16x128xf32, #tpu.memory_space<vmem>>, vector<8x128xf32>,
    %c1_i32_95 = arith.constant 1 : i32
    %c8_i32_96 = arith.constant 8 : i32
    %210 = arith.muli %c1_i32_95, %c8_i32_96 : i32
    %211 = tpu.assume_multiple %210, 8 : i32
    %212 = arith.index_cast %211 : i32 to index
    %c0_97 = arith.constant 0 : index
    %213 = vector.load %arg5[%212, %c0_97] : memref<16x128xf32, #tpu.memory_space<vmem>>, vector<8x128xf32>
    %c1_i32_98 = arith.constant 1 : i32
    %214 = tpu.dynamic_rotate %213 by %c1_i32_98 dim 1 : vector<8x128xf32>, i32 -> vector<8x128xf32>
    %215 = arith.select %24, %213, %214 : vector<8x128xi1>, vector<8x128xf32>
    %c127_i32_99 = arith.constant 127 : i32
    %216 = tpu.dynamic_rotate %213 by %c127_i32_99 dim 1 : vector<8x128xf32>, i32 -> vector<8x128xf32>
    %217 = arith.select %24, %216, %213 : vector<8x128xi1>, vector<8x128xf32>
    %218 = vector.broadcast %0 : f32 to vector<8x128xf32>
    %219 = arith.mulf %218, %215 : vector<8x128xf32>
    %220 = vector.broadcast %10 : f32 to vector<8x128xf32>
    %221 = arith.mulf %220, %217 : vector<8x128xf32>
    %222 = arith.addf %219, %221 : vector<8x128xf32>
    %223 = arith.addf %222, %26 : vector<8x128xf32>
    %cst_100 = arith.constant 0.000000e+00 : f32
    %224 = vector.broadcast %cst_100 : f32 to vector<8x128xf32>
    %225 = arith.maximumf %223, %224 : vector<8x128xf32>
    %226 = arith.mulf %49, %225 : vector<8x128xf32>
    %227 = arith.addf %99, %226 : vector<8x128xf32>
    %228 = vector.broadcast %1 : f32 to vector<8x128xf32>
    %229 = arith.mulf %228, %215 : vector<8x128xf32>
    %230 = vector.broadcast %11 : f32 to vector<8x128xf32>
    %231 = arith.mulf %230, %217 : vector<8x128xf32>
    %232 = arith.addf %229, %231 : vector<8x128xf32>
    %233 = arith.addf %232, %28 : vector<8x128xf32>
    %cst_101 = arith.constant 0.000000e+00 : f32
    %234 = vector.broadcast %cst_101 : f32 to vector<8x128xf32>
    %235 = arith.maximumf %233, %234 : vector<8x128xf32>
    %236 = arith.mulf %54, %235 : vector<8x128xf32>
    %237 = arith.addf %227, %236 : vector<8x128xf32>
    %238 = vector.broadcast %2 : f32 to vector<8x128xf32>
    %239 = arith.mulf %238, %215 : vector<8x128xf32>
    %240 = vector.broadcast %12 : f32 to vector<8x128xf32>
    %241 = arith.mulf %240, %217 : vector<8x128xf32>
    %242 = arith.addf %239, %241 : vector<8x128xf32>
    %243 = arith.addf %242, %30 : vector<8x128xf32>
    %cst_102 = arith.constant 0.000000e+00 : f32
    %244 = vector.broadcast %cst_102 : f32 to vector<8x128xf32>
    %245 = arith.maximumf %243, %244 : vector<8x128xf32>
    %246 = arith.mulf %59, %245 : vector<8x128xf32>
    %247 = arith.addf %237, %246 : vector<8x128xf32>
    %248 = vector.broadcast %3 : f32 to vector<8x128xf32>
    %249 = arith.mulf %248, %215 : vector<8x128xf32>
    %250 = vector.broadcast %13 : f32 to vector<8x128xf32>
    %251 = arith.mulf %250, %217 : vector<8x128xf32>
    %252 = arith.addf %249, %251 : vector<8x128xf32>
    %253 = arith.addf %252, %32 : vector<8x128xf32>
    %cst_103 = arith.constant 0.000000e+00 : f32
    %254 = vector.broadcast %cst_103 : f32 to vector<8x128xf32>
    %255 = arith.maximumf %253, %254 : vector<8x128xf32>
    %256 = arith.mulf %64, %255 : vector<8x128xf32>
    %257 = arith.addf %247, %256 : vector<8x128xf32>
    %258 = vector.broadcast %4 : f32 to vector<8x128xf32>
    %259 = arith.mulf %258, %215 : vector<8x128xf32>
    %260 = vector.broadcast %14 : f32 to vector<8x128xf32>
    %261 = arith.mulf %260, %217 : vector<8x128xf32>
    %262 = arith.addf %259, %261 : vector<8x128xf32>
    %263 = arith.addf %262, %34 : vector<8x128xf32>
    %cst_104 = arith.constant 0.000000e+00 : f32
    %264 = vector.broadcast %cst_104 : f32 to vector<8x128xf32>
    %265 = arith.maximumf %263, %264 : vector<8x128xf32>
    %266 = arith.mulf %69, %265 : vector<8x128xf32>
    %267 = arith.addf %257, %266 : vector<8x128xf32>
    %268 = vector.broadcast %5 : f32 to vector<8x128xf32>
    %269 = arith.mulf %268, %215 : vector<8x128xf32>
    %270 = vector.broadcast %15 : f32 to vector<8x128xf32>
    %271 = arith.mulf %270, %217 : vector<8x128xf32>
    %272 = arith.addf %269, %271 : vector<8x128xf32>
    %273 = arith.addf %272, %36 : vector<8x128xf32>
    %cst_105 = arith.constant 0.000000e+00 : f32
    %274 = vector.broadcast %cst_105 : f32 to vector<8x128xf32>
    %275 = arith.maximumf %273, %274 : vector<8x128xf32>
    %276 = arith.mulf %74, %275 : vector<8x128xf32>
    %277 = arith.addf %267, %276 : vector<8x128xf32>
    %278 = vector.broadcast %6 : f32 to vector<8x128xf32>
    %279 = arith.mulf %278, %215 : vector<8x128xf32>
    %280 = vector.broadcast %16 : f32 to vector<8x128xf32>
    %281 = arith.mulf %280, %217 : vector<8x128xf32>
    %282 = arith.addf %279, %281 : vector<8x128xf32>
    %283 = arith.addf %282, %38 : vector<8x128xf32>
    %cst_106 = arith.constant 0.000000e+00 : f32
    %284 = vector.broadcast %cst_106 : f32 to vector<8x128xf32>
    %285 = arith.maximumf %283, %284 : vector<8x128xf32>
    %286 = arith.mulf %79, %285 : vector<8x128xf32>
    %287 = arith.addf %277, %286 : vector<8x128xf32>
    %288 = vector.broadcast %7 : f32 to vector<8x128xf32>
    %289 = arith.mulf %288, %215 : vector<8x128xf32>
    %290 = vector.broadcast %17 : f32 to vector<8x128xf32>
    %291 = arith.mulf %290, %217 : vector<8x128xf32>
    %292 = arith.addf %289, %291 : vector<8x128xf32>
    %293 = arith.addf %292, %40 : vector<8x128xf32>
    %cst_107 = arith.constant 0.000000e+00 : f32
    %294 = vector.broadcast %cst_107 : f32 to vector<8x128xf32>
    %295 = arith.maximumf %293, %294 : vector<8x128xf32>
    %296 = arith.mulf %84, %295 : vector<8x128xf32>
    %297 = arith.addf %287, %296 : vector<8x128xf32>
    %298 = vector.broadcast %8 : f32 to vector<8x128xf32>
    %299 = arith.mulf %298, %215 : vector<8x128xf32>
    %300 = vector.broadcast %18 : f32 to vector<8x128xf32>
    %301 = arith.mulf %300, %217 : vector<8x128xf32>
    %302 = arith.addf %299, %301 : vector<8x128xf32>
    %303 = arith.addf %302, %42 : vector<8x128xf32>
    %cst_108 = arith.constant 0.000000e+00 : f32
    %304 = vector.broadcast %cst_108 : f32 to vector<8x128xf32>
    %305 = arith.maximumf %303, %304 : vector<8x128xf32>
    %306 = arith.mulf %89, %305 : vector<8x128xf32>
    %307 = arith.addf %297, %306 : vector<8x128xf32>
    %308 = vector.broadcast %9 : f32 to vector<8x128xf32>
    %309 = arith.mulf %308, %215 : vector<8x128xf32>
    %310 = vector.broadcast %19 : f32 to vector<8x128xf32>
    %311 = arith.mulf %310, %217 : vector<8x128xf32>
    %312 = arith.addf %309, %311 : vector<8x128xf32>
    %313 = arith.addf %312, %44 : vector<8x128xf32>
    %cst_109 = arith.constant 0.000000e+00 : f32
    %314 = vector.broadcast %cst_109 : f32 to vector<8x128xf32>
    %315 = arith.maximumf %313, %314 : vector<8x128xf32>
    %316 = arith.mulf %94, %315 : vector<8x128xf32>
    %317 = arith.addf %307, %316 : vector<8x128xf32>
    %318 = arith.index_cast %211 : i32 to index
    %c0_110 = arith.constant 0 : index
    %319 = vector.load %arg6[%318, %c0_110] : memref<16x128xf32, #tpu.memory_space<vmem>>, vector<8x128xf32>
    tpu.vector_store %arg6[%318, %c0_110], %317 {strides = array<i32>} : memref<16x128xf32, #tpu.memory_space<vmem>>, vector<8x128xf32>,
    %c2_i32 = arith.constant 2 : i32
    return
  }
  func.func @transform_0(%arg0: i32) -> (i32, i32) {
    %c0_i32 = arith.constant 0 : i32
    %c0_i32_0 = arith.constant 0 : i32
    %c0_i32_1 = arith.constant 0 : i32
    return %c0_i32, %c0_i32_0 : i32, i32
  }
  func.func @transform_1(%arg0: i32) -> i32 {
    %c0_i32 = arith.constant 0 : i32
    %c0_i32_0 = arith.constant 0 : i32
    return %c0_i32 : i32
  }
  func.func @transform_2(%arg0: i32) -> (i32, i32) {
    %c0_i32 = arith.constant 0 : i32
    %c0_i32_0 = arith.constant 0 : i32
    %c0_i32_1 = arith.constant 0 : i32
    return %c0_i32, %c0_i32_0 : i32, i32
  }
  func.func @transform_3(%arg0: i32) -> i32 {
    %c0_i32 = arith.constant 0 : i32
    %c0_i32_0 = arith.constant 0 : i32
    return %c0_i32 : i32
  }
  func.func @transform_4(%arg0: i32) -> (i32, i32) {
    %c0_i32 = arith.constant 0 : i32
    %c0_i32_0 = arith.constant 0 : i32
    return %arg0, %c0_i32 : i32, i32
  }
  func.func @transform_5(%arg0: i32) -> (i32, i32) {
    %c0_i32 = arith.constant 0 : i32
    %c0_i32_0 = arith.constant 0 : i32
    return %arg0, %c0_i32 : i32, i32
  }
}

</mosaic_0001>

<llo_original>
// kernel: simple_nn_forward.1
$region0: #{simple_nn_forward.1}
  #allocation0 [shape = 'u32[]', space=smem, size = 0x4, offset = 0x4, fixed_abs, tag = 'smem constant byte address 0x4 - core index']
  #allocation1 [shape = 'u32[144,128]{1,0:T(1,128)}', space=vmem, size = 0x12000, scoped, tag = 'internal scratch']
  %s0 = inlined_call_operand.vmem [shape: f32[10,2], index: 0, kind: input, shape index: {}]
  %s1 = inlined_call_operand.vmem [shape: f32[10], index: 1, kind: input, shape index: {}]
  %s2 = inlined_call_operand.vmem [shape: f32[2,10], index: 2, kind: input, shape index: {}]
  %s3 = inlined_call_operand.vmem [shape: f32[2], index: 3, kind: input, shape index: {}]
  %s4 = inlined_call_operand.vmem [shape: f32[64,128], index: 4, kind: input, shape index: {}]
  %s5 = inlined_call_operand.vmem [shape: f32[64,128], index: 5, kind: output, shape index: {}]
  %s6 = sld [smem:[#allocation0]]
  $region69: #{simple_nn_forward.1} parent=0
    _
  %s8 = ssub.s32 1, %s6
  %s9 = scalar_select 0, %s8, %s6
  $region1: #{simple_nn_forward.1} parent=0
    #allocation2 [shape = 'u8[8192]{0}', space=smem, size = 0x2000, scoped, tag = 'input window, operand 0, single buffered']
    #allocation3 [shape = 's32[2]{0}', space=sflag, size = 0x8, scoped, tag = 'scoped memory for simple_nn_forward.1']
    #allocation4 [shape = 'u8[512]{0}', space=smem, size = 0x200, scoped, tag = 'input window, operand 1, single buffered']
    #allocation5 [shape = 's32[1]{0}', space=sflag, size = 0x4, scoped, tag = 'scoped memory for simple_nn_forward.1']
    #allocation6 [shape = 'u8[1024]{0}', space=smem, size = 0x400, scoped, tag = 'input window, operand 2, single buffered']
    #allocation7 [shape = 'u8[512]{0}', space=smem, size = 0x200, scoped, tag = 'input window, operand 3, single buffered']
    #allocation8 [shape = 's32[1]{0}', space=sflag, size = 0x4, scoped, tag = 'scoped memory for simple_nn_forward.1']
    %10 = vsyncpa [#allocation3], 0
    %11 = vsyncpa [#allocation5], 0
    %12 = vsyncpa [#allocation8], 0
    loop: start=0, step=1, limit=6
    $region2: #{simple_nn_forward.1} parent=1 // loop_pre_header
      _
    $region3: #{simple_nn_forward.1} parent=1 // loop_header
      %s14 = sphi 0, %s18
      %p15 = scmp.ge.s32.totalorder %s14, 6
      %s22 = sphi 0, %s22
      %s24 = sphi 0, %s22
      %s25 = sphi 0, %s24
      %s39 = sphi 0, %s25
      %s43 = sphi 0, %s43
      %s45 = sphi 0, %s43
      %s46 = sphi 0, %s45
      %s60 = sphi 0, %s46
      %s64 = sphi 0, %s64
      %s66 = sphi 0, %s64
      %s67 = sphi 0, %s66
      %s81 = sphi 0, %s67
      %s85 = sphi 0, %s85
      %s87 = sphi 0, %s85
      %s88 = sphi 0, %s87
      %s102 = sphi 0, %s88
      %s108 = sphi 0, %s110
      %s111 = sphi 0, %s108
      %s112 = sphi 0, %s111
      %s128 = sphi 0, %s112
      %s134 = sphi 0, %s136
      %s137 = sphi 0, %s134
      %s138 = sphi 0, %s137
      %s154 = sphi 0, %s138
    $region4: #{simple_nn_forward.1} parent=1 // loop_header_branch
      %17 = sbr.rel (%p15) target = $region8
    $region5: #{simple_nn_forward.1} parent=1 // loop_body
      %s19 = ssub.s32 %s14, 1
      %s20 = ssub.s32 %s14, 2
      %s21 = sadd.s32 %s14, 1
      %s23 = sadd.s32 %s22, 1
      %p26 = scmp.eq.s32.totalorder %s14, 3
      %p27 = scmp.ne.s32.totalorder %s22, %s24
      %p28 = scmp.eq.s32.totalorder %s14, 0
      %p29 = por %p27, %p28
      %p30 = scmp.ne.s32.totalorder %s22, %s24
      %p31 = scmp.eq.s32.totalorder %s19, 3
      %p32 = por %p30, %p31
      %p33 = scmp.ne.s32.totalorder %s24, %s25
      %p34 = scmp.eq.s32.totalorder %s19, 0
      %p35 = por %p33, %p34
      %p36 = scmp.ne.s32.totalorder %s24, %s25
      %p37 = scmp.eq.s32.totalorder %s20, 3
      %p38 = por %p36, %p37
      %p40 = scmp.ne.s32.totalorder %s25, %s39
      %p41 = scmp.eq.s32.totalorder %s20, 0
      %p42 = por %p40, %p41
      %s44 = sadd.s32 %s43, 1
      %p47 = scmp.eq.s32.totalorder %s14, 3
      %p48 = scmp.ne.s32.totalorder %s43, %s45
      %p49 = scmp.eq.s32.totalorder %s14, 0
      %p50 = por %p48, %p49
      %p51 = scmp.ne.s32.totalorder %s43, %s45
      %p52 = scmp.eq.s32.totalorder %s19, 3
      %p53 = por %p51, %p52
      %p54 = scmp.ne.s32.totalorder %s45, %s46
      %p55 = scmp.eq.s32.totalorder %s19, 0
      %p56 = por %p54, %p55
      %p57 = scmp.ne.s32.totalorder %s45, %s46
      %p58 = scmp.eq.s32.totalorder %s20, 3
      %p59 = por %p57, %p58
      %p61 = scmp.ne.s32.totalorder %s46, %s60
      %p62 = scmp.eq.s32.totalorder %s20, 0
      %p63 = por %p61, %p62
      %s65 = sadd.s32 %s64, 1
      %p68 = scmp.eq.s32.totalorder %s14, 3
      %p69 = scmp.ne.s32.totalorder %s64, %s66
      %p70 = scmp.eq.s32.totalorder %s14, 0
      %p71 = por %p69, %p70
      %p72 = scmp.ne.s32.totalorder %s64, %s66
      %p73 = scmp.eq.s32.totalorder %s19, 3
      %p74 = por %p72, %p73
      %p75 = scmp.ne.s32.totalorder %s66, %s67
      %p76 = scmp.eq.s32.totalorder %s19, 0
      %p77 = por %p75, %p76
      %p78 = scmp.ne.s32.totalorder %s66, %s67
      %p79 = scmp.eq.s32.totalorder %s20, 3
      %p80 = por %p78, %p79
      %p82 = scmp.ne.s32.totalorder %s67, %s81
      %p83 = scmp.eq.s32.totalorder %s20, 0
      %p84 = por %p82, %p83
      %s86 = sadd.s32 %s85, 1
      %p89 = scmp.eq.s32.totalorder %s14, 3
      %p90 = scmp.ne.s32.totalorder %s85, %s87
      %p91 = scmp.eq.s32.totalorder %s14, 0
      %p92 = por %p90, %p91
      %p93 = scmp.ne.s32.totalorder %s85, %s87
      %p94 = scmp.eq.s32.totalorder %s19, 3
      %p95 = por %p93, %p94
      %p96 = scmp.ne.s32.totalorder %s87, %s88
      %p97 = scmp.eq.s32.totalorder %s19, 0
      %p98 = por %p96, %p97
      %p99 = scmp.ne.s32.totalorder %s87, %s88
      %p100 = scmp.eq.s32.totalorder %s20, 3
      %p101 = por %p99, %p100
      %p103 = scmp.ne.s32.totalorder %s88, %s102
      %p104 = scmp.eq.s32.totalorder %s20, 0
      %p105 = por %p103, %p104
      %s106 = ssub.s32 %s14, %s21
      %p107 = scmp.eq.s32.totalorder %s106, 0
      %s109 = sadd.s32 %s108, 1
      %s110 = scalar_select %p107, %s108, %s109
      %p113 = pneg %p107
      %p114 = scmp.eq.s32.totalorder %s14, 3
      %p115 = por %p113, %p114
      %p116 = scmp.ne.s32.totalorder %s108, %s111
      %p117 = scmp.eq.s32.totalorder %s14, 0
      %p118 = por %p116, %p117
      %p119 = scmp.ne.s32.totalorder %s108, %s111
      %p120 = scmp.eq.s32.totalorder %s19, 3
      %p121 = por %p119, %p120
      %p122 = scmp.ne.s32.totalorder %s111, %s112
      %p123 = scmp.eq.s32.totalorder %s19, 0
      %p124 = por %p122, %p123
      %p125 = scmp.ne.s32.totalorder %s111, %s112
      %p126 = scmp.eq.s32.totalorder %s20, 3
      %p127 = por %p125, %p126
      %p129 = scmp.ne.s32.totalorder %s112, %s128
      %p130 = scmp.eq.s32.totalorder %s20, 0
      %p131 = por %p129, %p130
      %s132 = ssub.s32 %s14, %s21
      %p133 = scmp.eq.s32.totalorder %s132, 0
      %s135 = sadd.s32 %s134, 1
      %s136 = scalar_select %p133, %s134, %s135
      %p139 = pneg %p133
      %p140 = scmp.eq.s32.totalorder %s14, 3
      %p141 = por %p139, %p140
      %p142 = scmp.ne.s32.totalorder %s134, %s137
      %p143 = scmp.eq.s32.totalorder %s14, 0
      %p144 = por %p142, %p143
      %p145 = scmp.ne.s32.totalorder %s134, %s137
      %p146 = scmp.eq.s32.totalorder %s19, 3
      %p147 = por %p145, %p146
      %p148 = scmp.ne.s32.totalorder %s137, %s138
      %p149 = scmp.eq.s32.totalorder %s19, 0
      %p150 = por %p148, %p149
      %p151 = scmp.ne.s32.totalorder %s137, %s138
      %p152 = scmp.eq.s32.totalorder %s20, 3
      %p153 = por %p151, %p152
      %p155 = scmp.ne.s32.totalorder %s138, %s154
      %p156 = scmp.eq.s32.totalorder %s20, 0
      %p157 = por %p155, %p156
      %p158 = scmp.le.s32.totalorder 1, %s14
      %p159 = scmp.lt.s32.totalorder %s14, 5
      %p160 = pnand %p158, %p159
      %p161 = pneg %p160
      // Predicated region
      $region9: #{simple_nn_forward.1} parent=5 // pred_check
        _
      $region10: #{simple_nn_forward.1} parent=5 // pred_check_branch
        %163 = sbr.rel (%p160) target = $region12
      $region11: #{simple_nn_forward.1} parent=5 // pred_region
        %s164 = ssub.s32 %s14, 1
        // Predicated region
        $region13: #{simple_nn_forward.1} parent=11 // pred_check
          %p165 = pneg %p35
        $region14: #{simple_nn_forward.1} parent=11 // pred_check_branch
          %167 = sbr.rel (%p165) target = $region16
        $region15: #{simple_nn_forward.1} parent=11 // pred_region
          %s169 = ssub.s32 256, 256
          %170 = vsyncadd [#allocation3], %s169
          %s171 = sshll.u32 %s0, 4
          %s172 = int_to_ptr.vmem [resolvable:$true] %s171
          %177 = dma.vmem_to_smem %s172, 256, [#allocation2], [#allocation3], 128, 128, 8
        $region16: #{simple_nn_forward.1} parent=11 // pred_fallthru
          _
        // Predicated region
        $region17: #{simple_nn_forward.1} parent=11 // pred_check
          %p178 = pneg %p56
        $region18: #{simple_nn_forward.1} parent=11 // pred_check_branch
          %180 = sbr.rel (%p178) target = $region20
        $region19: #{simple_nn_forward.1} parent=11 // pred_region
          %s182 = ssub.s32 16, 16
          %183 = vsyncadd [#allocation5], %s182
          %s185 = sshll.u32 %s1, 4
          %s186 = int_to_ptr.vmem [resolvable:$true] %s185
          %188 = dma.vmem_to_smem %s186, 16, [#allocation4], [#allocation5]
        $region20: #{simple_nn_forward.1} parent=11 // pred_fallthru
          _
        // Predicated region
        $region21: #{simple_nn_forward.1} parent=11 // pred_check
          %p189 = pneg %p77
        $region22: #{simple_nn_forward.1} parent=11 // pred_check_branch
          %191 = sbr.rel (%p189) target = $region24
        $region23: #{simple_nn_forward.1} parent=11 // pred_region
          %s193 = ssub.s32 32, 32
          %194 = vsyncadd [#allocation5], %s193
          %s196 = sshll.u32 %s2, 4
          %s197 = int_to_ptr.vmem [resolvable:$true] %s196
          %199 = dma.vmem_to_smem %s197, 32, [#allocation6], [#allocation5]
        $region24: #{simple_nn_forward.1} parent=11 // pred_fallthru
          _
        // Predicated region
        $region25: #{simple_nn_forward.1} parent=11 // pred_check
          %p200 = pneg %p98
        $region26: #{simple_nn_forward.1} parent=11 // pred_check_branch
          %202 = sbr.rel (%p200) target = $region28
        $region27: #{simple_nn_forward.1} parent=11 // pred_region
          %s204 = ssub.s32 16, 16
          %205 = vsyncadd [#allocation8], %s204
          %s207 = sshll.u32 %s3, 4
          %s208 = int_to_ptr.vmem [resolvable:$true] %s207
          %210 = dma.vmem_to_smem %s208, 16, [#allocation7], [#allocation8]
        $region28: #{simple_nn_forward.1} parent=11 // pred_fallthru
          _
      $region12: #{simple_nn_forward.1} parent=5 // pred_fallthru
        _
      %p211 = scmp.lt.s32.totalorder %s14, 4
      // Predicated region
      $region29: #{simple_nn_forward.1} parent=5 // pred_check
        %p212 = pneg %p211
      $region30: #{simple_nn_forward.1} parent=5 // pred_check_branch
        %214 = sbr.rel (%p212) target = $region32
      $region31: #{simple_nn_forward.1} parent=5 // pred_region
        // Predicated region
        $region33: #{simple_nn_forward.1} parent=31 // pred_check
          %p215 = pneg %p118
        $region34: #{simple_nn_forward.1} parent=31 // pred_check_branch
          %217 = sbr.rel (%p215) target = $region36
        $region35: #{simple_nn_forward.1} parent=31 // pred_region
          %s218 = smul.u32 2, %s14
          %p219 = scmp.lt.s32.totalorder %s218, 7
          %s220 = scalar_select %p219, %s218, 7
          %s221 = smul.addr %s220, 8
          %s222 = scalar_lea.vmem %s4, %s221
          %s223 = smul.u32 2, %s14
        $region36: #{simple_nn_forward.1} parent=31 // pred_fallthru
          _
      $region32: #{simple_nn_forward.1} parent=5 // pred_fallthru
        _
      %p224 = scmp.le.s32.totalorder 1, %s14
      %p225 = scmp.lt.s32.totalorder %s14, 5
      %p226 = pnand %p224, %p225
      %p227 = pneg %p226
      // Predicated region
      $region37: #{simple_nn_forward.1} parent=5 // pred_check
        _
      $region38: #{simple_nn_forward.1} parent=5 // pred_check_branch
        %229 = sbr.rel (%p226) target = $region40
      $region39: #{simple_nn_forward.1} parent=5 // pred_region
        %s230 = ssub.s32 %s14, 1
        // Predicated region
        $region41: #{simple_nn_forward.1} parent=39 // pred_check
          %p231 = pneg %p35
        $region42: #{simple_nn_forward.1} parent=39 // pred_check_branch
          %233 = sbr.rel (%p231) target = $region44
        $region43: #{simple_nn_forward.1} parent=39 // pred_region
          %234 = dma.done [#allocation3], 256
        $region44: #{simple_nn_forward.1} parent=39 // pred_fallthru
          _
        // Predicated region
        $region45: #{simple_nn_forward.1} parent=39 // pred_check
          %p235 = pneg %p56
        $region46: #{simple_nn_forward.1} parent=39 // pred_check_branch
          %237 = sbr.rel (%p235) target = $region48
        $region47: #{simple_nn_forward.1} parent=39 // pred_region
          %238 = dma.done [#allocation5], 16
        $region48: #{simple_nn_forward.1} parent=39 // pred_fallthru
          _
        // Predicated region
        $region49: #{simple_nn_forward.1} parent=39 // pred_check
          %p239 = pneg %p77
        $region50: #{simple_nn_forward.1} parent=39 // pred_check_branch
          %241 = sbr.rel (%p239) target = $region52
        $region51: #{simple_nn_forward.1} parent=39 // pred_region
          %242 = dma.done [#allocation5], 32
        $region52: #{simple_nn_forward.1} parent=39 // pred_fallthru
          _
        // Predicated region
        $region53: #{simple_nn_forward.1} parent=39 // pred_check
          %p243 = pneg %p98
        $region54: #{simple_nn_forward.1} parent=39 // pred_check_branch
          %245 = sbr.rel (%p243) target = $region56
        $region55: #{simple_nn_forward.1} parent=39 // pred_region
          %246 = dma.done [#allocation8], 16
        $region56: #{simple_nn_forward.1} parent=39 // pred_fallthru
          _
        %247 = sfence
        %p248 = pneg %p35
        %p249 = pneg %p32
        %p250 = pneg %p56
        %p251 = pneg %p53
        %p252 = pneg %p77
        %p253 = pneg %p74
        %p254 = pneg %p98
        %p255 = pneg %p95
        %s256 = smul.u32 2, %s19
        %p257 = scmp.lt.s32.totalorder %s256, 7
        %s258 = scalar_select %p257, %s256, 7
        %s259 = smul.addr %s258, 8
        %s260 = scalar_lea.vmem %s4, %s259
        %p261 = pneg %p124
        %p262 = pneg %p121
        %p263 = pneg %p150
        %p264 = pneg %p147
        %s265 = smul.u32 2, %s19
        %p266 = scmp.lt.s32.totalorder %s265, 7
        %s267 = scalar_select %p266, %s265, 7
        %s268 = smul.addr %s267, 8
        %s269 = scalar_lea.vmem %s5, %s268
        %s270 = smul.u32 2, %s19
        %p271 = scmp.lt.s32.totalorder %s270, 7
        %s272 = scalar_select %p271, %s270, 7
        %s273 = smul.addr %s272, 8
        %s274 = scalar_lea.vmem %s4, %s273
        %s275 = smul.u32 2, %s19
        %s276 = smul.u32 2, %s19
        %p277 = scmp.lt.s32.totalorder %s276, 7
        %s278 = scalar_select %p277, %s276, 7
        %s279 = smul.addr %s278, 8
        %s280 = scalar_lea.vmem %s5, %s279
        %s281 = smul.u32 2, %s19
        %s282 = sld [smem:[#allocation2]]
        %s283 = sld [smem:[#allocation2 + $0x80]]
        %s284 = sld [smem:[#allocation2 + $0x100]]
        %s285 = sld [smem:[#allocation2 + $0x180]]
        %s286 = sld [smem:[#allocation2 + $0x200]]
        %s287 = sld [smem:[#allocation2 + $0x280]]
        %s288 = sld [smem:[#allocation2 + $0x300]]
        %s289 = sld [smem:[#allocation2 + $0x380]]
        %s290 = sld [smem:[#allocation2 + $0x400]]
        %s291 = sld [smem:[#allocation2 + $0x480]]
        %s292 = sld [smem:[#allocation2 + $0x1]]
        %s293 = sld [smem:[#allocation2 + $0x81]]
        %s294 = sld [smem:[#allocation2 + $0x101]]
        %s295 = sld [smem:[#allocation2 + $0x181]]
        %s296 = sld [smem:[#allocation2 + $0x201]]
        %s297 = sld [smem:[#allocation2 + $0x281]]
        %s298 = sld [smem:[#allocation2 + $0x301]]
        %s299 = sld [smem:[#allocation2 + $0x381]]
        %s300 = sld [smem:[#allocation2 + $0x401]]
        %s301 = sld [smem:[#allocation2 + $0x481]]
        %v302 = vlaneseq
        %v303 = vand.u32 %v302, 127
        %v304 = vand.u32 %v303, 1
        %vm305 = vcmp.eq.s32.totalorder %v304, 0
        %s306 = sld [smem:[#allocation4]]
        %v307 = vstv %s306
        %s308 = sld [smem:[#allocation4 + $0x1]]
        %v309 = vstv %s308
        %s310 = sld [smem:[#allocation4 + $0x2]]
        %v311 = vstv %s310
        %s312 = sld [smem:[#allocation4 + $0x3]]
        %v313 = vstv %s312
        %s314 = sld [smem:[#allocation4 + $0x4]]
        %v315 = vstv %s314
        %s316 = sld [smem:[#allocation4 + $0x5]]
        %v317 = vstv %s316
        %s318 = sld [smem:[#allocation4 + $0x6]]
        %v319 = vstv %s318
        %s320 = sld [smem:[#allocation4 + $0x7]]
        %v321 = vstv %s320
        %s322 = sld [smem:[#allocation4 + $0x8]]
        %v323 = vstv %s322
        %s324 = sld [smem:[#allocation4 + $0x9]]
        %v325 = vstv %s324
        %s326 = sld [smem:[#allocation6]]
        %s327 = sld [smem:[#allocation6 + $0x80]]
        %v328 = vstv %s326
        %v329 = vstv %s327
        %v330 = vsel %vm305, %v328, %v329
        %s331 = sld [smem:[#allocation6 + $0x1]]
        %s332 = sld [smem:[#allocation6 + $0x81]]
        %v333 = vstv %s331
        %v334 = vstv %s332
        %v335 = vsel %vm305, %v333, %v334
        %s336 = sld [smem:[#allocation6 + $0x2]]
        %s337 = sld [smem:[#allocation6 + $0x82]]
        %v338 = vstv %s336
        %v339 = vstv %s337
        %v340 = vsel %vm305, %v338, %v339
        %s341 = sld [smem:[#allocation6 + $0x3]]
        %s342 = sld [smem:[#allocation6 + $0x83]]
        %v343 = vstv %s341
        %v344 = vstv %s342
        %v345 = vsel %vm305, %v343, %v344
        %s346 = sld [smem:[#allocation6 + $0x4]]
        %s347 = sld [smem:[#allocation6 + $0x84]]
        %v348 = vstv %s346
        %v349 = vstv %s347
        %v350 = vsel %vm305, %v348, %v349
        %s351 = sld [smem:[#allocation6 + $0x5]]
        %s352 = sld [smem:[#allocation6 + $0x85]]
        %v353 = vstv %s351
        %v354 = vstv %s352
        %v355 = vsel %vm305, %v353, %v354
        %s356 = sld [smem:[#allocation6 + $0x6]]
        %s357 = sld [smem:[#allocation6 + $0x86]]
        %v358 = vstv %s356
        %v359 = vstv %s357
        %v360 = vsel %vm305, %v358, %v359
        %s361 = sld [smem:[#allocation6 + $0x7]]
        %s362 = sld [smem:[#allocation6 + $0x87]]
        %v363 = vstv %s361
        %v364 = vstv %s362
        %v365 = vsel %vm305, %v363, %v364
        %s366 = sld [smem:[#allocation6 + $0x8]]
        %s367 = sld [smem:[#allocation6 + $0x88]]
        %v368 = vstv %s366
        %v369 = vstv %s367
        %v370 = vsel %vm305, %v368, %v369
        %s371 = sld [smem:[#allocation6 + $0x9]]
        %s372 = sld [smem:[#allocation6 + $0x89]]
        %v373 = vstv %s371
        %v374 = vstv %s372
        %v375 = vsel %vm305, %v373, %v374
        %s376 = sld [smem:[#allocation7]]
        %s377 = sld [smem:[#allocation7 + $0x1]]
        %v378 = vstv %s376
        %v379 = vstv %s377
        %v380 = vsel %vm305, %v378, %v379
        %v381 = vld [vmem:[%s274] sm:$0xff]
        %382 = vrot.lane.b32.xlu0 %v381, 1
        %v383 = vpop.permute.xlu0 %382
        %v384 = vsel %vm305, %v381, %v383
        %385 = vrot.lane.b32.xlu0 %v381, 127
        %v386 = vpop.permute.xlu0 %385
        %v387 = vsel %vm305, %v386, %v381
        %v388 = vstv %s282
        %v389 = vmul.f32 %v388, %v384
        %v390 = vstv %s292
        %v391 = vmul.f32 %v390, %v387
        %v392 = vadd.f32 %v389, %v391
        %v393 = vadd.f32 %v392, %v307
        %v394 = vmax.f32 %v393, 0.0
        %v395 = vmul.f32 %v330, %v394
        %v396 = vadd.f32 %v380, %v395
        %v397 = vstv %s283
        %v398 = vmul.f32 %v397, %v384
        %v399 = vstv %s293
        %v400 = vmul.f32 %v399, %v387
        %v401 = vadd.f32 %v398, %v400
        %v402 = vadd.f32 %v401, %v309
        %v403 = vmax.f32 %v402, 0.0
        %v404 = vmul.f32 %v335, %v403
        %v405 = vadd.f32 %v396, %v404
        %v406 = vstv %s284
        %v407 = vmul.f32 %v406, %v384
        %v408 = vstv %s294
        %v409 = vmul.f32 %v408, %v387
        %v410 = vadd.f32 %v407, %v409
        %v411 = vadd.f32 %v410, %v311
        %v412 = vmax.f32 %v411, 0.0
        %v413 = vmul.f32 %v340, %v412
        %v414 = vadd.f32 %v405, %v413
        %v415 = vstv %s285
        %v416 = vmul.f32 %v415, %v384
        %v417 = vstv %s295
        %v418 = vmul.f32 %v417, %v387
        %v419 = vadd.f32 %v416, %v418
        %v420 = vadd.f32 %v419, %v313
        %v421 = vmax.f32 %v420, 0.0
        %v422 = vmul.f32 %v345, %v421
        %v423 = vadd.f32 %v414, %v422
        %v424 = vstv %s286
        %v425 = vmul.f32 %v424, %v384
        %v426 = vstv %s296
        %v427 = vmul.f32 %v426, %v387
        %v428 = vadd.f32 %v425, %v427
        %v429 = vadd.f32 %v428, %v315
        %v430 = vmax.f32 %v429, 0.0
        %v431 = vmul.f32 %v350, %v430
        %v432 = vadd.f32 %v423, %v431
        %v433 = vstv %s287
        %v434 = vmul.f32 %v433, %v384
        %v435 = vstv %s297
        %v436 = vmul.f32 %v435, %v387
        %v437 = vadd.f32 %v434, %v436
        %v438 = vadd.f32 %v437, %v317
        %v439 = vmax.f32 %v438, 0.0
        %v440 = vmul.f32 %v355, %v439
        %v441 = vadd.f32 %v432, %v440
        %v442 = vstv %s288
        %v443 = vmul.f32 %v442, %v384
        %v444 = vstv %s298
        %v445 = vmul.f32 %v444, %v387
        %v446 = vadd.f32 %v443, %v445
        %v447 = vadd.f32 %v446, %v319
        %v448 = vmax.f32 %v447, 0.0
        %v449 = vmul.f32 %v360, %v448
        %v450 = vadd.f32 %v441, %v449
        %v451 = vstv %s289
        %v452 = vmul.f32 %v451, %v384
        %v453 = vstv %s299
        %v454 = vmul.f32 %v453, %v387
        %v455 = vadd.f32 %v452, %v454
        %v456 = vadd.f32 %v455, %v321
        %v457 = vmax.f32 %v456, 0.0
        %v458 = vmul.f32 %v365, %v457
        %v459 = vadd.f32 %v450, %v458
        %v460 = vstv %s290
        %v461 = vmul.f32 %v460, %v384
        %v462 = vstv %s300
        %v463 = vmul.f32 %v462, %v387
        %v464 = vadd.f32 %v461, %v463
        %v465 = vadd.f32 %v464, %v323
        %v466 = vmax.f32 %v465, 0.0
        %v467 = vmul.f32 %v370, %v466
        %v468 = vadd.f32 %v459, %v467
        %v469 = vstv %s291
        %v470 = vmul.f32 %v469, %v384
        %v471 = vstv %s301
        %v472 = vmul.f32 %v471, %v387
        %v473 = vadd.f32 %v470, %v472
        %v474 = vadd.f32 %v473, %v325
        %v475 = vmax.f32 %v474, 0.0
        %v476 = vmul.f32 %v375, %v475
        %v477 = vadd.f32 %v468, %v476
        %478 = vst [vmem:[%s280] sm:$0xff] %v477
        %s479 = scalar_lea.vmem %s274, 8
        %v480 = vld [vmem:[%s479] sm:$0xff]
        %481 = vrot.lane.b32.xlu0 %v480, 1
        %v482 = vpop.permute.xlu0 %481
        %v483 = vsel %vm305, %v480, %v482
        %484 = vrot.lane.b32.xlu0 %v480, 127
        %v485 = vpop.permute.xlu0 %484
        %v486 = vsel %vm305, %v485, %v480
        %v487 = vmul.f32 %v388, %v483
        %v488 = vmul.f32 %v390, %v486
        %v489 = vadd.f32 %v487, %v488
        %v490 = vadd.f32 %v489, %v307
        %v491 = vmax.f32 %v490, 0.0
        %v492 = vmul.f32 %v330, %v491
        %v493 = vadd.f32 %v380, %v492
        %v494 = vmul.f32 %v397, %v483
        %v495 = vmul.f32 %v399, %v486
        %v496 = vadd.f32 %v494, %v495
        %v497 = vadd.f32 %v496, %v309
        %v498 = vmax.f32 %v497, 0.0
        %v499 = vmul.f32 %v335, %v498
        %v500 = vadd.f32 %v493, %v499
        %v501 = vmul.f32 %v406, %v483
        %v502 = vmul.f32 %v408, %v486
        %v503 = vadd.f32 %v501, %v502
        %v504 = vadd.f32 %v503, %v311
        %v505 = vmax.f32 %v504, 0.0
        %v506 = vmul.f32 %v340, %v505
        %v507 = vadd.f32 %v500, %v506
        %v508 = vmul.f32 %v415, %v483
        %v509 = vmul.f32 %v417, %v486
        %v510 = vadd.f32 %v508, %v509
        %v511 = vadd.f32 %v510, %v313
        %v512 = vmax.f32 %v511, 0.0
        %v513 = vmul.f32 %v345, %v512
        %v514 = vadd.f32 %v507, %v513
        %v515 = vmul.f32 %v424, %v483
        %v516 = vmul.f32 %v426, %v486
        %v517 = vadd.f32 %v515, %v516
        %v518 = vadd.f32 %v517, %v315
        %v519 = vmax.f32 %v518, 0.0
        %v520 = vmul.f32 %v350, %v519
        %v521 = vadd.f32 %v514, %v520
        %v522 = vmul.f32 %v433, %v483
        %v523 = vmul.f32 %v435, %v486
        %v524 = vadd.f32 %v522, %v523
        %v525 = vadd.f32 %v524, %v317
        %v526 = vmax.f32 %v525, 0.0
        %v527 = vmul.f32 %v355, %v526
        %v528 = vadd.f32 %v521, %v527
        %v529 = vmul.f32 %v442, %v483
        %v530 = vmul.f32 %v444, %v486
        %v531 = vadd.f32 %v529, %v530
        %v532 = vadd.f32 %v531, %v319
        %v533 = vmax.f32 %v532, 0.0
        %v534 = vmul.f32 %v360, %v533
        %v535 = vadd.f32 %v528, %v534
        %v536 = vmul.f32 %v451, %v483
        %v537 = vmul.f32 %v453, %v486
        %v538 = vadd.f32 %v536, %v537
        %v539 = vadd.f32 %v538, %v321
        %v540 = vmax.f32 %v539, 0.0
        %v541 = vmul.f32 %v365, %v540
        %v542 = vadd.f32 %v535, %v541
        %v543 = vmul.f32 %v460, %v483
        %v544 = vmul.f32 %v462, %v486
        %v545 = vadd.f32 %v543, %v544
        %v546 = vadd.f32 %v545, %v323
        %v547 = vmax.f32 %v546, 0.0
        %v548 = vmul.f32 %v370, %v547
        %v549 = vadd.f32 %v542, %v548
        %v550 = vmul.f32 %v469, %v483
        %v551 = vmul.f32 %v471, %v486
        %v552 = vadd.f32 %v550, %v551
        %v553 = vadd.f32 %v552, %v325
        %v554 = vmax.f32 %v553, 0.0
        %v555 = vmul.f32 %v375, %v554
        %v556 = vadd.f32 %v549, %v555
        %s557 = scalar_lea.vmem %s280, 8
        %558 = vst [vmem:[%s557] sm:$0xff] %v556
        %s559 = smul.u32 2, %s19
        %p560 = scmp.lt.s32.totalorder %s559, 7
        %s561 = scalar_select %p560, %s559, 7
        %s562 = smul.addr %s561, 8
        %s563 = scalar_lea.vmem %s5, %s562
        // Predicated region
        $region57: #{simple_nn_forward.1} parent=39 // pred_check
          %p564 = pneg %p147
        $region58: #{simple_nn_forward.1} parent=39 // pred_check_branch
          %566 = sbr.rel (%p564) target = $region60
        $region59: #{simple_nn_forward.1} parent=39 // pred_region
          %s567 = smul.u32 2, %s19
        $region60: #{simple_nn_forward.1} parent=39 // pred_fallthru
          _
      $region40: #{simple_nn_forward.1} parent=5 // pred_fallthru
        _
      %p568 = scmp.le.s32.totalorder 2, %s14
      // Predicated region
      $region61: #{simple_nn_forward.1} parent=5 // pred_check
        %p569 = pneg %p568
      $region62: #{simple_nn_forward.1} parent=5 // pred_check_branch
        %571 = sbr.rel (%p569) target = $region64
      $region63: #{simple_nn_forward.1} parent=5 // pred_region
        %s572 = ssub.s32 %s14, 2
        // Predicated region
        $region65: #{simple_nn_forward.1} parent=63 // pred_check
          %p573 = pneg %p153
        $region66: #{simple_nn_forward.1} parent=63 // pred_check_branch
          %575 = sbr.rel (%p573) target = $region68
        $region67: #{simple_nn_forward.1} parent=63 // pred_region
          %s576 = smul.u32 2, %s20
          %p577 = scmp.lt.s32.totalorder %s576, 7
          %s578 = scalar_select %p577, %s576, 7
          %s579 = smul.addr %s578, 8
          %s580 = scalar_lea.vmem %s5, %s579
        $region68: #{simple_nn_forward.1} parent=63 // pred_fallthru
          _
      $region64: #{simple_nn_forward.1} parent=5 // pred_fallthru
        _
    $region6: #{simple_nn_forward.1} parent=1 // loop_footer
      %s18 = sadd.s32 1, %s14
    $region7: #{simple_nn_forward.1} parent=1 // loop_footer_branch
      %13 = sbr.rel target = $region3
    $region8: #{simple_nn_forward.1} parent=1 // loop_exit
      _
    %581 = vsyncpa [#allocation3], 1
    %s582 = scalar_lea.sflag [#allocation3], 1
    %583 = vsyncpa %s582, 1
    %584 = vsyncpa [#allocation5], 1
    %585 = vsyncpa [#allocation8], 1

</llo_original>
